<compile_context>
chip_gen: v7x
topology: tpu7x:2x2x1
jax: 0.10.0
libtpu: 0.0.40
codegen_flags: <defaults>
</compile_context>

<pallas_src>
import functools

import jax
import jax.numpy as jnp
from jax.experimental import pallas as pl
from jax.experimental.pallas import tpu as pltpu

_EPS = 1e-12                    # matches torch cosine_embedding_loss EPSILON
_LANES = 128
_BLOCK_BYTES_BUDGET = 2 << 20   # per-input-block VMEM budget (v5e-safe)
_SPLIT_BYTES = 1 << 20          # split into >=2 blocks once each half >= this
_VMEM_LIMIT_BYTES = 32 << 20    # scoped VMEM limit (ok on v5e/v6e/v7x)


# --------------------------------------------------------------------------- #
# Kernels
# --------------------------------------------------------------------------- #
def _rowwise_cos_loss(p, t):
    """Per-row cosine-embedding loss (y=+1) in fp32; returns (rows, 1)."""
    p = p.astype(jnp.float32)
    t = t.astype(jnp.float32)
    dot = jnp.sum(p * t, axis=-1, keepdims=True)
    pp = jnp.sum(p * p, axis=-1, keepdims=True) + _EPS
    tt = jnp.sum(t * t, axis=-1, keepdims=True) + _EPS
    return 1.0 - dot * jax.lax.rsqrt(pp * tt)


def _row_mask(shape, tile_rows, valid_rows):
    row = jax.lax.broadcasted_iota(jnp.int32, shape, 0)
    row = row + pl.program_id(0) * tile_rows
    return row < valid_rows


def _cos_loss_rows_kernel(p_ref, t_ref, o_ref):
    # reduction='none': p_ref/t_ref (tile, C); o_ref (tile, 1) fp32.
    o_ref[...] = _rowwise_cos_loss(p_ref[...], t_ref[...])


def _cos_sum_rows_kernel(p_ref, t_ref, o_ref, *, valid_rows, tile_rows, need_mask):
    # Lane-sparse fallback: per-block partial sum of per-row losses.
    loss = _rowwise_cos_loss(p_ref[...], t_ref[...])            # (tile, 1)
    if need_mask:
        loss = jnp.where(_row_mask(loss.shape, tile_rows, valid_rows), loss, 0.0)
    o_ref[...] = jnp.sum(loss, keepdims=True).reshape(1, 1, 1)


def _cos_sum_rows_weighted_kernel(p_ref, t_ref, w_ref, o_ref, *,
                                  valid_rows, tile_rows, need_mask):
    # Weighted mean/sum fused in one pass (no (R,1) HBM round trip).
    loss = _rowwise_cos_loss(p_ref[...], t_ref[...]) * w_ref[...].astype(jnp.float32)
    if need_mask:
        loss = jnp.where(_row_mask(loss.shape, tile_rows, valid_rows), loss, 0.0)
    o_ref[...] = jnp.sum(loss, keepdims=True).reshape(1, 1, 1)


def _segsum_lanes(x, seg_width):
    """Segmented lane sum via a log2 roll chain.

    x: (rows, 128).  After the chain, lane l holds sum_{m<seg_width} x[:, l+m];
    at segment-start lanes l = j*seg_width (seg_width | 128, so no wrap) this is
    the exact per-segment sum.  log2(seg_width) XLU rolls + VPU adds per array.
    """
    s = 1
    while s < seg_width:
        x = x + pltpu.roll(x, _LANES - s, axis=1)   # lane l += lane l+s
        s *= 2
    return x


def _cos_sum_packed_kernel(p_ref, t_ref, o_ref, *, seg_width, valid_rows,
                           tile_rows, need_mask):
    # Lane-dense fused sum: blocks are (tile, 128) holding 128/seg_width rows
    # per lane row; per-row sums live at lanes j*seg_width after the roll chain.
    p = p_ref[...].astype(jnp.float32)
    t = t_ref[...].astype(jnp.float32)
    dot = _segsum_lanes(p * t, seg_width)
    pp = _segsum_lanes(p * p, seg_width) + _EPS
    tt = _segsum_lanes(t * t, seg_width) + _EPS
    loss = 1.0 - dot * jax.lax.rsqrt(pp * tt)       # valid at segment-start lanes
    lane = jax.lax.broadcasted_iota(jnp.int32, loss.shape, 1)
    mask = (lane & (seg_width - 1)) == 0            # seg_width is a power of two
    if need_mask:
        mask = jnp.logical_and(mask, _row_mask(loss.shape, tile_rows, valid_rows))
    loss = jnp.where(mask, loss, 0.0)
    o_ref[...] = jnp.sum(loss, keepdims=True).reshape(1, 1, 1)


# --------------------------------------------------------------------------- #
# Tiling helpers / wrappers
# --------------------------------------------------------------------------- #
def _sublane_multiple(dtype):
    # 8 for f32, 16 for bf16, 32 for int8/fp8 (sublane packing multiple).
    return max(8, 32 // jnp.dtype(dtype).itemsize)


def _pick_tile_rows(num_rows, lane_width, itemsize, sublane):
    """Largest sublane-aligned row tile within the per-input VMEM budget."""
    padded_lanes = pl.cdiv(max(lane_width, 1), _LANES) * _LANES   # VMEM lane padding
    row_bytes = padded_lanes * itemsize
    rows = max(sublane, (_BLOCK_BYTES_BUDGET // row_bytes) // sublane * sublane)
    # v7x megacore: keep >= 2 grid blocks whenever there is enough real data to
    # split, so the "parallel" grid axis shards across both TensorCores.
    if num_rows * lane_width * itemsize >= 2 * _SPLIT_BYTES:
        half = pl.cdiv(pl.cdiv(num_rows, 2), sublane) * sublane
        rows = min(rows, half)
    if rows >= num_rows:
        return num_rows, 1          # block dims == full dims is always legal
    return rows, pl.cdiv(num_rows, rows)


def _cost(rows, coords, itemsize, out_bytes):
    # ~3 muls + 3 adds per element, ~6 ops + 1 rsqrt per row; mem-bound anyway.
    return pl.CostEstimate(
        flops=int(rows) * (6 * int(coords) + 6),
        transcendentals=int(rows),
        bytes_accessed=2 * int(rows) * int(coords) * int(itemsize) + int(out_bytes))


def _compiler_params():
    return pltpu.CompilerParams(dimension_semantics=("parallel",),
                                vmem_limit_bytes=_VMEM_LIMIT_BYTES)


def _cos_loss_rows(pred2d, target2d):
    """Per-row loss for 2D [R, C] inputs -> (R, 1) fp32 (reduction='none')."""
    R, C = pred2d.shape
    itemsize = pred2d.dtype.itemsize
    tile, nblk = _pick_tile_rows(R, C, itemsize, _sublane_multiple(pred2d.dtype))
    return pl.pallas_call(
        _cos_loss_rows_kernel,
        out_shape=jax.ShapeDtypeStruct((R, 1), jnp.float32),
        grid=(nblk,),
        in_specs=[pl.BlockSpec((tile, C), lambda i: (i, 0)),
                  pl.BlockSpec((tile, C), lambda i: (i, 0))],
        out_specs=pl.BlockSpec((tile, 1), lambda i: (i, 0)),
        compiler_params=_compiler_params(),
        cost_estimate=_cost(R, C, itemsize, R * 4),
    )(pred2d, target2d)


def _cos_loss_sum(pred2d, target2d, weight_col=None):
    """Fused (optionally weighted) sum of per-row losses -> fp32 scalar."""
    R, C = pred2d.shape
    itemsize = pred2d.dtype.itemsize
    sublane = _sublane_multiple(pred2d.dtype)

    pack = (weight_col is None and C < _LANES and _LANES % C == 0
            and R % (_LANES // C) == 0)

    if pack:
        # Free, contiguous reshape: 128/C consecutive rows share one lane row.
        k = _LANES // C
        rp = R // k
        p = pred2d.reshape(rp, _LANES)
        t = target2d.reshape(rp, _LANES)
        tile, nblk = _pick_tile_rows(rp, _LANES, itemsize, sublane)
        kern = functools.partial(_cos_sum_packed_kernel, seg_width=C,
                                 valid_rows=rp, tile_rows=tile,
                                 need_mask=(rp % tile) != 0)
        in_arrays = (p, t)
        in_specs = [pl.BlockSpec((tile, _LANES), lambda i: (i, 0)),
                    pl.BlockSpec((tile, _LANES), lambda i: (i, 0))]
    else:
        tile, nblk = _pick_tile_rows(R, C, itemsize, sublane)
        need_mask = (R % tile) != 0
        if weight_col is None:
            kern = functools.partial(_cos_sum_rows_kernel, valid_rows=R,
                                     tile_rows=tile, need_mask=need_mask)
            in_arrays = (pred2d, target2d)
            in_specs = [pl.BlockSpec((tile, C), lambda i: (i, 0)),
                        pl.BlockSpec((tile, C), lambda i: (i, 0))]
        else:
            kern = functools.partial(_cos_sum_rows_weighted_kernel, valid_rows=R,
                                     tile_rows=tile, need_mask=need_mask)
            in_arrays = (pred2d, target2d, weight_col)
            in_specs = [pl.BlockSpec((tile, C), lambda i: (i, 0)),
                        pl.BlockSpec((tile, C), lambda i: (i, 0)),
                        pl.BlockSpec((tile, 1), lambda i: (i, 0))]

    partial_sums = pl.pallas_call(
        kern,
        out_shape=jax.ShapeDtypeStruct((nblk, 1, 1), jnp.float32),
        grid=(nblk,),
        in_specs=in_specs,
        out_specs=pl.BlockSpec((1, 1, 1), lambda i: (i, 0, 0)),
        compiler_params=_compiler_params(),
        cost_estimate=_cost(R, C, itemsize, nblk * 4),
    )(*in_arrays)
    return jnp.sum(partial_sums)


# --------------------------------------------------------------------------- #
# Module (mmdet weighted_loss semantics)
# --------------------------------------------------------------------------- #
class ContrastiveCosLoss:
    """JAX/Pallas port of mmdet3d ContrastiveCosLoss (no learnable params)."""

    def __init__(self, reduction="mean", loss_weight=1.0):
        self.reduction = reduction
        self.loss_weight = loss_weight

    def __call__(self, pred, target, weight=None, avg_factor=None,
                 reduction_override=None):
        assert reduction_override in (None, "none", "mean", "sum")
        reduction = reduction_override if reduction_override else self.reduction

        if target.size == 0:
            return self.loss_weight * (jnp.sum(pred) * 0.0)

        bs, num_feat, dims = pred.shape
        R = bs * num_feat
        p2 = pred.reshape(R, dims)
        t2 = target.reshape(R, dims)

        if reduction in ("mean", "sum"):
            if reduction == "sum" and avg_factor is not None:
                raise ValueError('avg_factor can not be used with reduction="sum"')
            w_col = None
            if weight is not None:
                w_col = jnp.broadcast_to(weight, (bs, num_feat))
                w_col = w_col.reshape(R, 1).astype(jnp.float32)
            total = _cos_loss_sum(p2, t2, w_col)               # fp32 scalar
            if reduction == "mean":
                denom = float(R) if avg_factor is None else avg_factor
                total = total / denom
            return (self.loss_weight * total).astype(pred.dtype)

        # reduction == 'none': per-row losses, weighting in fp32.
        loss = _cos_loss_rows(p2, t2).reshape(bs, num_feat)     # fp32
        if weight is not None:
            loss = loss * jnp.broadcast_to(weight, (bs, num_feat)).astype(jnp.float32)
        return (self.loss_weight * loss).astype(pred.dtype)


# --------------------------------------------------------------------------- #
# Pure-JAX reference & self-test
# --------------------------------------------------------------------------- #
def _weight_reduce_loss(loss, weight=None, reduction="mean", avg_factor=None):
    if weight is not None:
        loss = loss * weight.astype(loss.dtype)
    if avg_factor is None:
        if reduction == "mean":
            return jnp.mean(loss)
        if reduction == "sum":
            return jnp.sum(loss)
        return loss
    if reduction == "mean":
        return jnp.sum(loss) / avg_factor
    if reduction == "none":
        return loss
    raise ValueError('avg_factor can not be used with reduction="sum"')


def _reference_loss(pred, target, weight=None, reduction="mean",
                    avg_factor=None, loss_weight=1.0):
    bs, nf, d = pred.shape
    p = pred.reshape(bs * nf, d).astype(jnp.float32)
    t = target.reshape(bs * nf, d).astype(jnp.float32)
    dot = jnp.sum(p * t, axis=-1)
    pp = jnp.sum(p * p, axis=-1) + _EPS
    tt = jnp.sum(t * t, axis=-1) + _EPS
    loss = (1.0 - dot / jnp.sqrt(pp * tt)).reshape(bs, nf)
    out = _weight_reduce_loss(loss, weight, reduction, avg_factor)
    return (loss_weight * out).astype(pred.dtype)


if __name__ == "__main__":
    key = jax.random.PRNGKey(0)
    k1, k2, k3, k4, k5 = jax.random.split(key, 5)

    # [num_samples, num_dir, num_coords]; C=32 divides 128 -> packed sum path.
    bs, num_dir, num_coords = 2, 8, 32
    pred = jax.random.normal(k1, (bs, num_dir, num_coords), dtype=jnp.float32)
    target = jax.random.normal(k2, (bs, num_dir, num_coords), dtype=jnp.float32)
    weight = jax.random.uniform(k3, (bs, num_dir), dtype=jnp.float32)

    loss_mod = ContrastiveCosLoss(reduction="mean", loss_weight=1.0)

    # Packed lane-dense fused-sum kernel (common 'mean' path).
    out_mean = jax.block_until_ready(loss_mod(pred, target))
    # Per-row kernel (reduction='none').
    out_none = jax.block_until_ready(
        loss_mod(pred, target, reduction_override="none"))
    # Fused weighted-sum kernel.
    out_wsum = jax.block_until_ready(
        loss_mod(pred, target, weight=weight, reduction_override="sum"))

    assert jnp.allclose(out_mean, _reference_loss(pred, target, reduction="mean"),
                        atol=1e-5, rtol=1e-5), out_mean
    assert jnp.allclose(out_none, _reference_loss(pred, target, reduction="none"),
                        atol=1e-5, rtol=1e-5)
    assert jnp.allclose(out_wsum, _reference_loss(pred, target, weight=weight,
                                                  reduction="sum"),
                        atol=1e-5, rtol=1e-5), out_wsum

    # Lane-sparse fallback fused-sum path: C=48 does not divide 128.
    pred2 = jax.random.normal(k4, (3, 5, 48), dtype=jnp.float32)
    target2 = jax.random.normal(k5, (3, 5, 48), dtype=jnp.float32)
    out2 = jax.block_until_ready(loss_mod(pred2, target2))
    assert jnp.allclose(out2, _reference_loss(pred2, target2, reduction="mean"),
                        atol=1e-5, rtol=1e-5), out2

    print("KERNEL_OK")
</pallas_src>

<mosaic_0001>
module attributes {stable_mosaic.version = 11 : i64} {
  func.func @_cos_sum_packed_kernel(%arg0: i32, %arg1: memref<4x128xf32, #tpu.memory_space<vmem>>, %arg2: memref<4x128xf32, #tpu.memory_space<vmem>>, %arg3: memref<1x1x1xf32, #tpu.memory_space<vmem>>) attributes {dimension_semantics = [#tpu.dimension_semantics<parallel>], iteration_bounds = array<i64: 1>, scalar_prefetch = 0 : i64, scratch_operands = 0 : i64, tpu.core_type = #tpu.core_type<tc>, window_params = [{transform_indices = @transform_0, window_bounds = array<i64: 4, 128>}, {transform_indices = @transform_1, window_bounds = array<i64: 4, 128>}, {transform_indices = @transform_2, window_bounds = array<i64: 1, 1, 1>}]} {
    %c0 = arith.constant 0 : index
    %c0_0 = arith.constant 0 : index
    %0 = vector.load %arg1[%c0, %c0_0] : memref<4x128xf32, #tpu.memory_space<vmem>>, vector<4x128xf32>
    %c0_1 = arith.constant 0 : index
    %c0_2 = arith.constant 0 : index
    %1 = vector.load %arg2[%c0_1, %c0_2] : memref<4x128xf32, #tpu.memory_space<vmem>>, vector<4x128xf32>
    %2 = arith.mulf %0, %1 : vector<4x128xf32>
    %c127_i32 = arith.constant 127 : i32
    %3 = tpu.dynamic_rotate %2 by %c127_i32 dim 1 : vector<4x128xf32>, i32 -> vector<4x128xf32>
    %4 = arith.addf %2, %3 : vector<4x128xf32>
    %c126_i32 = arith.constant 126 : i32
    %5 = tpu.dynamic_rotate %4 by %c126_i32 dim 1 : vector<4x128xf32>, i32 -> vector<4x128xf32>
    %6 = arith.addf %4, %5 : vector<4x128xf32>
    %c124_i32 = arith.constant 124 : i32
    %7 = tpu.dynamic_rotate %6 by %c124_i32 dim 1 : vector<4x128xf32>, i32 -> vector<4x128xf32>
    %8 = arith.addf %6, %7 : vector<4x128xf32>
    %c120_i32 = arith.constant 120 : i32
    %9 = tpu.dynamic_rotate %8 by %c120_i32 dim 1 : vector<4x128xf32>, i32 -> vector<4x128xf32>
    %10 = arith.addf %8, %9 : vector<4x128xf32>
    %c112_i32 = arith.constant 112 : i32
    %11 = tpu.dynamic_rotate %10 by %c112_i32 dim 1 : vector<4x128xf32>, i32 -> vector<4x128xf32>
    %12 = arith.addf %10, %11 : vector<4x128xf32>
    %13 = arith.mulf %0, %0 : vector<4x128xf32>
    %c127_i32_3 = arith.constant 127 : i32
    %14 = tpu.dynamic_rotate %13 by %c127_i32_3 dim 1 : vector<4x128xf32>, i32 -> vector<4x128xf32>
    %15 = arith.addf %13, %14 : vector<4x128xf32>
    %c126_i32_4 = arith.constant 126 : i32
    %16 = tpu.dynamic_rotate %15 by %c126_i32_4 dim 1 : vector<4x128xf32>, i32 -> vector<4x128xf32>
    %17 = arith.addf %15, %16 : vector<4x128xf32>
    %c124_i32_5 = arith.constant 124 : i32
    %18 = tpu.dynamic_rotate %17 by %c124_i32_5 dim 1 : vector<4x128xf32>, i32 -> vector<4x128xf32>
    %19 = arith.addf %17, %18 : vector<4x128xf32>
    %c120_i32_6 = arith.constant 120 : i32
    %20 = tpu.dynamic_rotate %19 by %c120_i32_6 dim 1 : vector<4x128xf32>, i32 -> vector<4x128xf32>
    %21 = arith.addf %19, %20 : vector<4x128xf32>
    %c112_i32_7 = arith.constant 112 : i32
    %22 = tpu.dynamic_rotate %21 by %c112_i32_7 dim 1 : vector<4x128xf32>, i32 -> vector<4x128xf32>
    %23 = arith.addf %21, %22 : vector<4x128xf32>
    %cst = arith.constant 9.99999996E-13 : f32
    %24 = vector.broadcast %cst : f32 to vector<4x128xf32>
    %25 = arith.addf %23, %24 : vector<4x128xf32>
    %26 = arith.mulf %1, %1 : vector<4x128xf32>
    %c127_i32_8 = arith.constant 127 : i32
    %27 = tpu.dynamic_rotate %26 by %c127_i32_8 dim 1 : vector<4x128xf32>, i32 -> vector<4x128xf32>
    %28 = arith.addf %26, %27 : vector<4x128xf32>
    %c126_i32_9 = arith.constant 126 : i32
    %29 = tpu.dynamic_rotate %28 by %c126_i32_9 dim 1 : vector<4x128xf32>, i32 -> vector<4x128xf32>
    %30 = arith.addf %28, %29 : vector<4x128xf32>
    %c124_i32_10 = arith.constant 124 : i32
    %31 = tpu.dynamic_rotate %30 by %c124_i32_10 dim 1 : vector<4x128xf32>, i32 -> vector<4x128xf32>
    %32 = arith.addf %30, %31 : vector<4x128xf32>
    %c120_i32_11 = arith.constant 120 : i32
    %33 = tpu.dynamic_rotate %32 by %c120_i32_11 dim 1 : vector<4x128xf32>, i32 -> vector<4x128xf32>
    %34 = arith.addf %32, %33 : vector<4x128xf32>
    %c112_i32_12 = arith.constant 112 : i32
    %35 = tpu.dynamic_rotate %34 by %c112_i32_12 dim 1 : vector<4x128xf32>, i32 -> vector<4x128xf32>
    %36 = arith.addf %34, %35 : vector<4x128xf32>
    %cst_13 = arith.constant 9.99999996E-13 : f32
    %37 = vector.broadcast %cst_13 : f32 to vector<4x128xf32>
    %38 = arith.addf %36, %37 : vector<4x128xf32>
    %39 = arith.mulf %25, %38 : vector<4x128xf32>
    %40 = math.rsqrt %39 : vector<4x128xf32>
    %41 = arith.mulf %12, %40 : vector<4x128xf32>
    %cst_14 = arith.constant 1.000000e+00 : f32
    %42 = vector.broadcast %cst_14 : f32 to vector<4x128xf32>
    %43 = arith.subf %42, %41 : vector<4x128xf32>
    %44 = tpu.iota {dimensions = array<i32: 1>} : vector<4x128xi32>
    %c31_i32 = arith.constant 31 : i32
    %45 = vector.broadcast %c31_i32 : i32 to vector<4x128xi32>
    %46 = arith.andi %44, %45 : vector<4x128xi32>
    %c0_i32 = arith.constant 0 : i32
    %47 = vector.broadcast %c0_i32 : i32 to vector<4x128xi32>
    %48 = arith.cmpi eq, %46, %47 : vector<4x128xi32>
    %cst_15 = arith.constant 0.000000e+00 : f32
    %49 = vector.broadcast %cst_15 : f32 to vector<4x128xf32>
    %50 = arith.select %48, %43, %49 : vector<4x128xi1>, vector<4x128xf32>
    %51 = vector.shape_cast %50 : vector<4x128xf32> to vector<1x4x128xf32>
    %cst_16 = arith.constant dense<0.000000e+00> : vector<1xf32>
    %52 = vector.multi_reduction <add>, %51, %cst_16 [1, 2] : vector<1x4x128xf32> to vector<1xf32>
    %53 = vector.shape_cast %52 : vector<1xf32> to vector<1x1x1xf32>
    %54 = vector.extract %53[0, 0, 0] : f32 from vector<1x1x1xf32>
    %55 = vector.broadcast %54 : f32 to vector<1x1xf32>
    %56 = vector.shape_cast %55 : vector<1x1xf32> to vector<1x1x1xf32>
    %c0_17 = arith.constant 0 : index
    %c0_18 = arith.constant 0 : index
    %c0_19 = arith.constant 0 : index
    %57 = vector.load %arg3[%c0_17, %c0_18, %c0_19] : memref<1x1x1xf32, #tpu.memory_space<vmem>>, vector<1x1x1xf32>
    tpu.vector_store %arg3[%c0_17, %c0_18, %c0_19], %56 {strides = array<i32>} : memref<1x1x1xf32, #tpu.memory_space<vmem>>, vector<1x1x1xf32>,
    return
  }
  func.func @transform_0(%arg0: i32) -> (i32, i32) {
    %c0_i32 = arith.constant 0 : i32
    %c0_i32_0 = arith.constant 0 : i32
    return %arg0, %c0_i32 : i32, i32
  }
  func.func @transform_1(%arg0: i32) -> (i32, i32) {
    %c0_i32 = arith.constant 0 : i32
    %c0_i32_0 = arith.constant 0 : i32
    return %arg0, %c0_i32 : i32, i32
  }
  func.func @transform_2(%arg0: i32) -> (i32, i32, i32) {
    %c0_i32 = arith.constant 0 : i32
    %c0_i32_0 = arith.constant 0 : i32
    %c0_i32_1 = arith.constant 0 : i32
    return %arg0, %c0_i32, %c0_i32_0 : i32, i32, i32
  }
}

</mosaic_0001>

<llo_original>
// kernel: tpu_custom_call.1
$region0: #{tpu_custom_call.1}
  #allocation0 [shape = 'u32[]', space=smem, size = 0x4, offset = 0x4, fixed_abs, tag = 'smem constant byte address 0x4 - core index']
  #allocation1 [shape = 'u32[144,128]{1,0:T(1,128)}', space=vmem, size = 0x12000, scoped, tag = 'internal scratch']
  %s0 = inlined_call_operand.hbm [shape: f32[4,128], index: 0, kind: input, shape index: {}]
  %s1 = inlined_call_operand.hbm [shape: f32[4,128], index: 1, kind: input, shape index: {}]
  %s2 = inlined_call_operand.hbm [shape: f32[1,1,1], index: 2, kind: output, shape index: {}]
  %s3 = sld [smem:[#allocation0]]
  $region26: #{tpu_custom_call.1} parent=0
    _
  %s5 = ssub.s32 1, %s3
  %s6 = scalar_select 0, %s5, %s3
  $region1: #{tpu_custom_call.1} parent=0
    #allocation2 [shape = 'u8[2048]{0}', space=vmem, size = 0x800, scoped, tag = 'input window, operand 0, single buffered']
    #allocation3 [shape = 's32[1]{0}', space=sflag, size = 0x4, scoped, tag = 'scoped memory for tpu_custom_call.1']
    #allocation4 [shape = 's32[1]{0}', space=sflag, size = 0x4, scoped, tag = 'scoped memory for tpu_custom_call.1']
    #allocation5 [shape = 'u8[2048]{0}', space=vmem, size = 0x800, scoped, tag = 'input window, operand 1, single buffered']
    #allocation6 [shape = 's32[1]{0}', space=sflag, size = 0x4, scoped, tag = 'scoped memory for tpu_custom_call.1']
    #allocation7 [shape = 'u8[512]{0}', space=vmem, size = 0x400, scoped, tag = 'output window, operand 0, single buffered']
    %7 = vsyncpa [#allocation3], 0
    %8 = vsyncpa [#allocation6], 0
    %9 = vsyncpa [#allocation4], 0
    // Predicated region
    $region2: #{tpu_custom_call.1} parent=1 // pred_check
      _
    $region3: #{tpu_custom_call.1} parent=1 // pred_check_branch
      %11 = sbr.rel (0) target = $region5
    $region4: #{tpu_custom_call.1} parent=1 // pred_region
      %s13 = ssub.s32 64, 64
      %14 = vsyncadd [#allocation3], %s13
      %s16 = sshll.u32 [#allocation2], 4
      %s17 = int_to_ptr.vmem [resolvable:$true] %s16
      %19 = dma.hbm_to_vmem [thread:$0]  %s0, 64, %s17, [#allocation3]
    $region5: #{tpu_custom_call.1} parent=1 // pred_fallthru
      _
    // Predicated region
    $region6: #{tpu_custom_call.1} parent=1 // pred_check
      _
    $region7: #{tpu_custom_call.1} parent=1 // pred_check_branch
      %21 = sbr.rel (0) target = $region9
    $region8: #{tpu_custom_call.1} parent=1 // pred_region
      %s23 = ssub.s32 64, 64
      %24 = vsyncadd [#allocation6], %s23
      %s26 = sshll.u32 [#allocation5], 4
      %s27 = int_to_ptr.vmem [resolvable:$true] %s26
      %29 = dma.hbm_to_vmem [thread:$0]  %s1, 64, %s27, [#allocation6]
    $region9: #{tpu_custom_call.1} parent=1 // pred_fallthru
      _
    // Predicated region
    $region10: #{tpu_custom_call.1} parent=1 // pred_check
      _
    $region11: #{tpu_custom_call.1} parent=1 // pred_check_branch
      %31 = sbr.rel (0) target = $region13
    $region12: #{tpu_custom_call.1} parent=1 // pred_region
      %32 = dma.done [#allocation3], 64
    $region13: #{tpu_custom_call.1} parent=1 // pred_fallthru
      _
    // Predicated region
    $region14: #{tpu_custom_call.1} parent=1 // pred_check
      _
    $region15: #{tpu_custom_call.1} parent=1 // pred_check_branch
      %34 = sbr.rel (0) target = $region17
    $region16: #{tpu_custom_call.1} parent=1 // pred_region
      %35 = dma.done [#allocation6], 64
    $region17: #{tpu_custom_call.1} parent=1 // pred_fallthru
      _
    %v36 = vld [vmem:[#allocation2] sm:$0xf]
    %v37 = vld [vmem:[#allocation5] sm:$0xf]
    %v38 = vmul.f32 %v36, %v37
    %39 = vrot.lane.b32.xlu0 %v38, 127
    %v40 = vpop.permute.xlu0 %39
    %v41 = vadd.f32 %v38, %v40
    %42 = vrot.lane.b32.xlu0 %v41, 126
    %v43 = vpop.permute.xlu0 %42
    %v44 = vadd.f32 %v41, %v43
    %45 = vrot.lane.b32.xlu0 %v44, 124
    %v46 = vpop.permute.xlu0 %45
    %v47 = vadd.f32 %v44, %v46
    %48 = vrot.lane.b32.xlu0 %v47, 120
    %v49 = vpop.permute.xlu0 %48
    %v50 = vadd.f32 %v47, %v49
    %51 = vrot.lane.b32.xlu0 %v50, 112
    %v52 = vpop.permute.xlu0 %51
    %v53 = vadd.f32 %v50, %v52
    %v54 = vmul.f32 %v36, %v36
    %55 = vrot.lane.b32.xlu0 %v54, 127
    %v56 = vpop.permute.xlu0 %55
    %v57 = vadd.f32 %v54, %v56
    %58 = vrot.lane.b32.xlu0 %v57, 126
    %v59 = vpop.permute.xlu0 %58
    %v60 = vadd.f32 %v57, %v59
    %61 = vrot.lane.b32.xlu0 %v60, 124
    %v62 = vpop.permute.xlu0 %61
    %v63 = vadd.f32 %v60, %v62
    %64 = vrot.lane.b32.xlu0 %v63, 120
    %v65 = vpop.permute.xlu0 %64
    %v66 = vadd.f32 %v63, %v65
    %67 = vrot.lane.b32.xlu0 %v66, 112
    %v68 = vpop.permute.xlu0 %67
    %v69 = vadd.f32 %v66, %v68
    %v70 = vadd.f32 %v69, 1e-12
    %v71 = vmul.f32 %v37, %v37
    %72 = vrot.lane.b32.xlu0 %v71, 127
    %v73 = vpop.permute.xlu0 %72
    %v74 = vadd.f32 %v71, %v73
    %75 = vrot.lane.b32.xlu0 %v74, 126
    %v76 = vpop.permute.xlu0 %75
    %v77 = vadd.f32 %v74, %v76
    %78 = vrot.lane.b32.xlu0 %v77, 124
    %v79 = vpop.permute.xlu0 %78
    %v80 = vadd.f32 %v77, %v79
    %81 = vrot.lane.b32.xlu0 %v80, 120
    %v82 = vpop.permute.xlu0 %81
    %v83 = vadd.f32 %v80, %v82
    %84 = vrot.lane.b32.xlu0 %v83, 112
    %v85 = vpop.permute.xlu0 %84
    %v86 = vadd.f32 %v83, %v85
    %v87 = vadd.f32 %v86, 1e-12
    %v88 = vmul.f32 %v70, %v87
    %v89 = vrsqrt.pop %v88
    %v90 = vmul.f32 %v53, %v89
    %v91 = vsub.f32 1.0, %v90
    %v92 = vlaneseq
    %v93 = vand.u32 %v92, 127
    %v94 = vand.u32 %v93, 31
    %vm95 = vcmp.eq.s32.totalorder %v94, 0
    %v96 = vsel %vm95, %v91, 0.0
    %vm97 = vcmask 1043456
    %v98 = vsel %vm97, %v96, 0.0
    %99 = vadd.xlane.f32.xlu0 %v98
    %v100 = vpop.xlane.xlu0 %99
    %v101 = vrot.slane %v100, 4
    %v102 = vadd.f32 %v100, %v101
    %v103 = vrot.slane %v102, 2
    %v104 = vadd.f32 %v102, %v103
    %v105 = vrot.slane %v104, 1
    %v106 = vadd.f32 %v104, %v105
    %s107 = vtos %v106
    %v108 = vstv %s107
    %vm109 = vcmask 0
    %110 = vst.msk [vmem:[#allocation7] sm:$0x1] %vm109, %v108
    // Predicated region
    $region18: #{tpu_custom_call.1} parent=1 // pred_check
      _
    $region19: #{tpu_custom_call.1} parent=1 // pred_check_branch
      %112 = sbr.rel (0) target = $region21
    $region20: #{tpu_custom_call.1} parent=1 // pred_region
      %s114 = ssub.s32 16, 16
      %115 = vsyncadd [#allocation4], %s114
      %s117 = sshll.u32 [#allocation7], 4
      %s118 = int_to_ptr.vmem [resolvable:$true] %s117
      %120 = dma.vmem_to_hbm [thread:$0]  %s118, 16, %s2, [#allocation4]
    $region21: #{tpu_custom_call.1} parent=1 // pred_fallthru
      _
    // Predicated region
    $region22: #{tpu_custom_call.1} parent=1 // pred_check
      _
    $region23: #{tpu_custom_call.1} parent=1 // pred_check_branch
      %122 = sbr.rel (0) target = $region25
    $region24: #{tpu_custom_call.1} parent=1 // pred_region
      %123 = dma.done [#allocation4], 16
    $region25: #{tpu_custom_call.1} parent=1 // pred_fallthru
      _
    %124 = vsyncpa [#allocation3], 1
    %125 = vsyncpa [#allocation6], 1
    %126 = vsyncpa [#allocation4], 1

</llo_original>
